<compile_context>
chip_gen: v6e
topology: v6e:2x2x1
jax: 0.10.0
libtpu: 0.0.40
codegen_flags: <defaults>
</compile_context>

<pallas_src>
import functools

import jax
import jax.numpy as jnp
from jax.experimental import pallas as pl
from jax.experimental.pallas import tpu as pltpu

LANE = 128
SUBLANE = 8


def _round_up(x, m):
    return (x + m - 1) // m * m


def _cdiv(a, b):
    return (a + b - 1) // b


def _mimlp_kernel(*refs, num_inputs, num_layers, relu_flags, in_offsets,
                  d_total, k0_pad, compute_dtype):
    """refs = (x_0..x_{N-1}, [W_0, shift_0, ..., W_{L-1}, shift_{L-1}], out, x_scr).

    x_i:     (TM, D_i)          raw inputs (f32), un-concatenated
    W_l:     (K_pad, N_pad)     compute_dtype; BN/bias scale pre-folded; VMEM-resident
    shift_l: (1, N_pad)         f32 (bias + folded eval-BN shift)
    out:     (TM, N_last_pad)
    x_scr:   (TM, k0_pad) f32   VMEM scratch used as the in-kernel "concat" buffer
    """
    x_refs = refs[:num_inputs]
    wsh_refs = refs[num_inputs:num_inputs + 2 * num_layers]
    out_ref = refs[num_inputs + 2 * num_layers]
    x_scr = refs[num_inputs + 2 * num_layers + 1]

    tm = x_scr.shape[0]
    # Assemble the "concatenated" multi-input activation directly in VMEM (no HBM
    # round trip).  Zero the padded tail every step so uninitialized-scratch
    # garbage (possible NaNs) never reaches the MXU.
    if k0_pad > d_total:
        x_scr[:, d_total:] = jnp.zeros((tm, k0_pad - d_total), jnp.float32)
    for i in range(num_inputs):                       # statically unrolled, static offsets
        di = x_refs[i].shape[-1]
        x_scr[:, in_offsets[i]:in_offsets[i] + di] = x_refs[i][...].astype(jnp.float32)
    h = x_scr[...].astype(compute_dtype)              # one cast for the MXU

    for l in range(num_layers):                       # statically unrolled
        w_ref = wsh_refs[2 * l]
        sh_ref = wsh_refs[2 * l + 1]
        acc = jnp.dot(h, w_ref[...], preferred_element_type=jnp.float32)
        acc = acc + sh_ref[...]                       # f32 epilogue: bias + folded eval-BN shift
        if relu_flags[l]:
            acc = jnp.maximum(acc, 0.0)
        if l + 1 < num_layers:
            h = acc.astype(compute_dtype)             # low-precision operand for next MXU pass
        else:
            out_ref[...] = acc.astype(out_ref.dtype)


def prepare_params(mil_weights, mil_bias, mlp_layers, eps=1e-5,
                   compute_dtype=jnp.bfloat16):
    """One-time parameter prep: transpose / concat / fold BN scale / pad / cast, done ONCE.

    mil_weights:  list of (O0, D_i) f32 weights (PyTorch layout) of MultiInputLinear.
    mil_bias:     (O0,) shared bias (singlebias=True).
    mlp_layers:   list of (W (O, K), b (O,), bn_or_None), bn = (gamma, beta, mean, var).
    compute_dtype: matmul operand dtype. bf16 = native MXU rate; pass jnp.float32 for a
                   safer-precision mode (slower f32 MXU passes, no activation rounding).
    """
    in_dims = tuple(int(w.shape[1]) for w in mil_weights)
    in_offsets = tuple(int(sum(in_dims[:i])) for i in range(len(in_dims)))
    d_total = int(sum(in_dims))
    k0_pad = _round_up(d_total, LANE)
    n0 = int(mil_weights[0].shape[0])
    n0_pad = _round_up(n0, LANE)

    # Layer 0: fused MultiInputLinear -> one (K_total, O0) weight, concatenated along K.
    w0 = jnp.concatenate([jnp.asarray(w, jnp.float32).T for w in mil_weights], axis=0)
    w0 = jnp.pad(w0, ((0, k0_pad - d_total), (0, n0_pad - n0)))
    shift0 = jnp.pad(jnp.asarray(mil_bias, jnp.float32), (0, n0_pad - n0)).reshape(1, n0_pad)
    layers = [(w0.astype(compute_dtype), shift0, False)]   # no activation after the MIL

    k_prev, k_prev_pad = n0, n0_pad
    for (w, b, bn) in mlp_layers:
        n = int(w.shape[0])
        n_pad = _round_up(n, LANE)
        wt = jnp.asarray(w, jnp.float32).T                 # (K, N): transpose once, here
        b = jnp.asarray(b, jnp.float32)
        if bn is not None:
            # Eval-mode BatchNorm folded:  BN(x@W + b) = x@(W*s) + ((b - mean)*s + beta),
            # s = gamma / sqrt(var + eps).  The scale goes into the WEIGHT columns, so the
            # kernel epilogue per layer is just an add (+ReLU): no per-tile VALU multiply.
            # TODO(synk): training-mode batch statistics / running-stat updates not implemented.
            gamma, beta, mean, var = (jnp.asarray(t, jnp.float32) for t in bn)
            s = gamma * jax.lax.rsqrt(var + eps)
            wt = wt * s[None, :]
            shift, relu = (b - mean) * s + beta, True
        else:
            shift, relu = b, False
        wt = jnp.pad(wt, ((0, k_prev_pad - k_prev), (0, n_pad - n)))
        layers.append((wt.astype(compute_dtype),
                       jnp.pad(shift, (0, n_pad - n)).reshape(1, n_pad),
                       relu))
        k_prev, k_prev_pad = n, n_pad

    return dict(layers=layers, in_dims=in_dims, in_offsets=in_offsets,
                d_total=d_total, k0_pad=k0_pad,
                out_dim=k_prev, out_pad=k_prev_pad, compute_dtype=compute_dtype)


def multi_input_mlp_forward(inputs, params, out_dtype=jnp.bfloat16):
    """inputs: list of (B, D_i) arrays. Returns (B, out_dim) in out_dtype (f32 accumulation)."""
    layers = params["layers"]
    num_layers = len(layers)
    num_inputs = len(inputs)
    relu_flags = tuple(bool(l[2]) for l in layers)
    in_dims, in_offsets = params["in_dims"], params["in_offsets"]
    d_total, k0_pad = params["d_total"], params["k0_pad"]
    out_dim, out_pad = params["out_dim"], params["out_pad"]
    compute_dtype = params["compute_dtype"]

    assert num_inputs == len(in_dims)
    B = int(inputs[0].shape[0])
    for x, d in zip(inputs, in_dims):
        # TODO(synk): broadcastable-but-different batch shapes not supported in the kernel.
        assert int(x.shape[0]) == B and int(x.shape[-1]) == d

    # Batch tiling: >= 2 tiles whenever B allows it (so "parallel" can split over v7x's
    # two TensorCores), tiles up to 512 rows to amortize per-grid-step overhead.
    # No explicit row padding: Pallas masks the ragged last tile; garbage rows never escape.
    if B <= SUBLANE:
        tm = B
    else:
        tm = min(512, _round_up(_cdiv(B, 2), SUBLANE))
    grid_m = _cdiv(B, tm)

    kernel = functools.partial(
        _mimlp_kernel, num_inputs=num_inputs, num_layers=num_layers,
        relu_flags=relu_flags, in_offsets=in_offsets, d_total=d_total,
        k0_pad=k0_pad, compute_dtype=compute_dtype)

    # Raw inputs go straight to the kernel (full last dim, so no (8,128) constraint);
    # no wrapper-side concat / pad / cast HBM round trip.
    in_specs = [pl.BlockSpec((tm, d), lambda m: (m, 0)) for d in in_dims]
    flat_args = list(inputs)
    for (w, sh, _) in layers:
        # Constant block index -> weights/shifts stay resident in VMEM across batch tiles.
        # TODO(synk): on VMEM-tight v7x configs (64 MiB) mark these resident specs
        # pipeline_mode=pl.Buffered(1); double-buffering a constant-index operand only
        # doubles its footprint.
        in_specs.append(pl.BlockSpec(w.shape, lambda m: (0, 0)))
        in_specs.append(pl.BlockSpec(sh.shape, lambda m: (0, 0)))
        flat_args += [w, sh]

    # Rough VMEM budget (hint only): double-buffered activations/outputs + resident params
    # + f32 intermediates + the f32 assembly scratch.  Floor 32 MiB (v5e default is 16 MiB),
    # cap 64 MiB (v7x physical per-TC VMEM).
    in_bytes = sum(2 * tm * d * jnp.dtype(x.dtype).itemsize for x, d in zip(inputs, in_dims))
    w_bytes = sum(2 * (w.size * w.dtype.itemsize + sh.size * sh.dtype.itemsize)
                  for (w, sh, _) in layers)
    max_n_pad = max(w.shape[1] for (w, _, _) in layers)
    act_bytes = tm * k0_pad * 4 + 2 * tm * max_n_pad * 4
    out_bytes = 2 * tm * out_pad * jnp.dtype(out_dtype).itemsize
    vmem_limit = int(min(max(2 * (in_bytes + w_bytes + act_bytes + out_bytes) + (4 << 20),
                             32 << 20), 64 << 20))

    out = pl.pallas_call(
        kernel,
        out_shape=jax.ShapeDtypeStruct((B, out_pad), out_dtype),
        grid_spec=pltpu.PrefetchScalarGridSpec(
            num_scalar_prefetch=0,
            grid=(grid_m,),
            in_specs=in_specs,
            out_specs=pl.BlockSpec((tm, out_pad), lambda m: (m, 0)),
            scratch_shapes=[pltpu.VMEM((tm, k0_pad), jnp.float32)],
        ),
        compiler_params=pltpu.CompilerParams(
            dimension_semantics=("parallel",),      # megacore split over batch tiles (v7x)
            vmem_limit_bytes=vmem_limit,
        ),
    )(*flat_args)

    return out[:, :out_dim]


def _reference(inputs, mil_weights, mil_bias, mlp_layers, eps=1e-5):
    """Pure-JAX f32 reference mirroring the PyTorch forward (eval-mode BatchNorm)."""
    y = sum(x @ w.T for x, w in zip(inputs, mil_weights)) + mil_bias
    for (w, b, bn) in mlp_layers:
        y = y @ w.T + b
        if bn is not None:
            gamma, beta, mean, var = bn
            y = gamma * (y - mean) / jnp.sqrt(var + eps) + beta
            y = jnp.maximum(y, 0.0)
    return y


if __name__ == "__main__":
    key = jax.random.PRNGKey(0)

    # MultiInputMLP(input_dims=(32, 16, 48), 64, 96, 32)
    input_dims = (32, 16, 48)
    layer_dims = (64, 96, 32)
    batch = 8

    keys = iter(jax.random.split(key, 64))

    inputs = [jax.random.normal(next(keys), (batch, d), jnp.float32)
              for d in input_dims]

    # MultiInputLinear(bias=True, singlebias=True): per-input weights, one shared bias.
    mil_weights = [0.05 * jax.random.normal(next(keys), (layer_dims[0], d), jnp.float32)
                   for d in input_dims]
    mil_bias = 0.01 * jax.random.normal(next(keys), (layer_dims[0],), jnp.float32)

    # MLP(64, 96, 32): Linear + BatchNorm1d + ReLU, then final Linear (no norm/act).
    mlp_layers = []
    for i in range(len(layer_dims) - 1):
        w = 0.05 * jax.random.normal(next(keys), (layer_dims[i + 1], layer_dims[i]),
                                     jnp.float32)
        b = 0.01 * jax.random.normal(next(keys), (layer_dims[i + 1],), jnp.float32)
        if i < len(layer_dims) - 2:
            gamma = 1.0 + 0.1 * jax.random.normal(next(keys), (layer_dims[i + 1],), jnp.float32)
            beta = 0.1 * jax.random.normal(next(keys), (layer_dims[i + 1],), jnp.float32)
            mean = 0.1 * jax.random.normal(next(keys), (layer_dims[i + 1],), jnp.float32)
            var = jnp.abs(1.0 + 0.1 * jax.random.normal(next(keys),
                                                        (layer_dims[i + 1],), jnp.float32))
            bn = (gamma, beta, mean, var)
        else:
            bn = None
        mlp_layers.append((w, b, bn))

    # One-time parameter prep (transpose / concat / fold-BN / pad / bf16), then forward.
    params = prepare_params(mil_weights, mil_bias, mlp_layers)
    out = multi_input_mlp_forward(inputs, params)
    out = jax.block_until_ready(out)

    ref = _reference(inputs, mil_weights, mil_bias, mlp_layers)
    assert out.shape == (batch, layer_dims[-1])
    out_f32 = out.astype(jnp.float32)
    err = float(jnp.max(jnp.abs(out_f32 - ref)))
    assert jnp.allclose(out_f32, ref, atol=2e-2, rtol=2e-2), f"mismatch vs reference: {err}"

    print("KERNEL_OK")
</pallas_src>

<mosaic_0001>
module attributes {stable_mosaic.version = 11 : i64} {
  func.func @_mimlp_kernel(%arg0: i32, %arg1: memref<8x32xf32, #tpu.memory_space<vmem>>, %arg2: memref<8x16xf32, #tpu.memory_space<vmem>>, %arg3: memref<8x48xf32, #tpu.memory_space<vmem>>, %arg4: memref<128x128xbf16, #tpu.memory_space<vmem>>, %arg5: memref<1x128xf32, #tpu.memory_space<vmem>>, %arg6: memref<128x128xbf16, #tpu.memory_space<vmem>>, %arg7: memref<1x128xf32, #tpu.memory_space<vmem>>, %arg8: memref<128x128xbf16, #tpu.memory_space<vmem>>, %arg9: memref<1x128xf32, #tpu.memory_space<vmem>>, %arg10: memref<8x128xbf16, #tpu.memory_space<vmem>>, %arg11: memref<8x128xf32, #tpu.memory_space<vmem>>) attributes {dimension_semantics = [#tpu.dimension_semantics<parallel>], iteration_bounds = array<i64: 1>, scalar_prefetch = 0 : i64, scratch_operands = 1 : i64, tpu.core_type = #tpu.core_type<tc>, window_params = [{transform_indices = @transform_0, window_bounds = array<i64: 8, 32>}, {transform_indices = @transform_1, window_bounds = array<i64: 8, 16>}, {transform_indices = @transform_2, window_bounds = array<i64: 8, 48>}, {pipeline_mode = #tpu.pipeline_mode<synchronous>, transform_indices = @transform_3, window_bounds = array<i64: 128, 128>}, {pipeline_mode = #tpu.pipeline_mode<synchronous>, transform_indices = @transform_4, window_bounds = array<i64: 1, 128>}, {pipeline_mode = #tpu.pipeline_mode<synchronous>, transform_indices = @transform_5, window_bounds = array<i64: 128, 128>}, {pipeline_mode = #tpu.pipeline_mode<synchronous>, transform_indices = @transform_6, window_bounds = array<i64: 1, 128>}, {pipeline_mode = #tpu.pipeline_mode<synchronous>, transform_indices = @transform_7, window_bounds = array<i64: 128, 128>}, {pipeline_mode = #tpu.pipeline_mode<synchronous>, transform_indices = @transform_8, window_bounds = array<i64: 1, 128>}, {transform_indices = @transform_9, window_bounds = array<i64: 8, 128>}]} {
    %cst = arith.constant 0.000000e+00 : f32
    %0 = vector.broadcast %cst : f32 to vector<8x32xf32>
    %c0 = arith.constant 0 : index
    %c96 = arith.constant 96 : index
    %1 = vector.load %arg11[%c0, %c96] : memref<8x128xf32, #tpu.memory_space<vmem>>, vector<8x32xf32>
    tpu.vector_store %arg11[%c0, %c96], %0 {strides = array<i32>} : memref<8x128xf32, #tpu.memory_space<vmem>>, vector<8x32xf32>,
    %c0_0 = arith.constant 0 : index
    %c0_1 = arith.constant 0 : index
    %2 = vector.load %arg1[%c0_0, %c0_1] : memref<8x32xf32, #tpu.memory_space<vmem>>, vector<8x32xf32>
    %c0_2 = arith.constant 0 : index
    %c0_3 = arith.constant 0 : index
    %3 = vector.load %arg11[%c0_2, %c0_3] : memref<8x128xf32, #tpu.memory_space<vmem>>, vector<8x32xf32>
    tpu.vector_store %arg11[%c0_2, %c0_3], %2 {strides = array<i32>} : memref<8x128xf32, #tpu.memory_space<vmem>>, vector<8x32xf32>,
    %c0_4 = arith.constant 0 : index
    %c0_5 = arith.constant 0 : index
    %4 = vector.load %arg2[%c0_4, %c0_5] : memref<8x16xf32, #tpu.memory_space<vmem>>, vector<8x16xf32>
    %c0_6 = arith.constant 0 : index
    %c32 = arith.constant 32 : index
    %5 = vector.load %arg11[%c0_6, %c32] : memref<8x128xf32, #tpu.memory_space<vmem>>, vector<8x16xf32>
    tpu.vector_store %arg11[%c0_6, %c32], %4 {strides = array<i32>} : memref<8x128xf32, #tpu.memory_space<vmem>>, vector<8x16xf32>,
    %c0_7 = arith.constant 0 : index
    %c0_8 = arith.constant 0 : index
    %6 = vector.load %arg3[%c0_7, %c0_8] : memref<8x48xf32, #tpu.memory_space<vmem>>, vector<8x48xf32>
    %c0_9 = arith.constant 0 : index
    %c48 = arith.constant 48 : index
    %7 = vector.load %arg11[%c0_9, %c48] : memref<8x128xf32, #tpu.memory_space<vmem>>, vector<8x48xf32>
    tpu.vector_store %arg11[%c0_9, %c48], %6 {strides = array<i32>} : memref<8x128xf32, #tpu.memory_space<vmem>>, vector<8x48xf32>,
    %c0_10 = arith.constant 0 : index
    %c0_11 = arith.constant 0 : index
    %8 = vector.load %arg11[%c0_10, %c0_11] : memref<8x128xf32, #tpu.memory_space<vmem>>, vector<8x128xf32>
    %9 = arith.truncf %8 : vector<8x128xf32> to vector<8x128xbf16>
    %c0_12 = arith.constant 0 : index
    %c0_13 = arith.constant 0 : index
    %10 = vector.load %arg4[%c0_12, %c0_13] : memref<128x128xbf16, #tpu.memory_space<vmem>>, vector<128x128xbf16>
    %cst_14 = arith.constant dense<0.000000e+00> : vector<8x128xf32>
    %11 = tpu.matmul %9, %10, %cst_14 {dimension_numbers = #tpu.dot_dimension_numbers<[1], [0], [0], [1], [0, 0, 1, 1], [], []>} : vector<8x128xbf16>, vector<128x128xbf16>, vector<8x128xf32> -> vector<8x128xf32>
    %c0_15 = arith.constant 0 : index
    %c0_16 = arith.constant 0 : index
    %12 = vector.load %arg5[%c0_15, %c0_16] : memref<1x128xf32, #tpu.memory_space<vmem>>, vector<1x128xf32>
    %13 = vector.broadcast %12 : vector<1x128xf32> to vector<8x128xf32>
    %14 = arith.addf %11, %13 : vector<8x128xf32>
    %15 = arith.truncf %14 : vector<8x128xf32> to vector<8x128xbf16>
    %c0_17 = arith.constant 0 : index
    %c0_18 = arith.constant 0 : index
    %16 = vector.load %arg6[%c0_17, %c0_18] : memref<128x128xbf16, #tpu.memory_space<vmem>>, vector<128x128xbf16>
    %cst_19 = arith.constant dense<0.000000e+00> : vector<8x128xf32>
    %17 = tpu.matmul %15, %16, %cst_19 {dimension_numbers = #tpu.dot_dimension_numbers<[1], [0], [0], [1], [0, 0, 1, 1], [], []>} : vector<8x128xbf16>, vector<128x128xbf16>, vector<8x128xf32> -> vector<8x128xf32>
    %c0_20 = arith.constant 0 : index
    %c0_21 = arith.constant 0 : index
    %18 = vector.load %arg7[%c0_20, %c0_21] : memref<1x128xf32, #tpu.memory_space<vmem>>, vector<1x128xf32>
    %19 = vector.broadcast %18 : vector<1x128xf32> to vector<8x128xf32>
    %20 = arith.addf %17, %19 : vector<8x128xf32>
    %cst_22 = arith.constant 0.000000e+00 : f32
    %21 = vector.broadcast %cst_22 : f32 to vector<8x128xf32>
    %22 = arith.maximumf %20, %21 : vector<8x128xf32>
    %23 = arith.truncf %22 : vector<8x128xf32> to vector<8x128xbf16>
    %c0_23 = arith.constant 0 : index
    %c0_24 = arith.constant 0 : index
    %24 = vector.load %arg8[%c0_23, %c0_24] : memref<128x128xbf16, #tpu.memory_space<vmem>>, vector<128x128xbf16>
    %cst_25 = arith.constant dense<0.000000e+00> : vector<8x128xf32>
    %25 = tpu.matmul %23, %24, %cst_25 {dimension_numbers = #tpu.dot_dimension_numbers<[1], [0], [0], [1], [0, 0, 1, 1], [], []>} : vector<8x128xbf16>, vector<128x128xbf16>, vector<8x128xf32> -> vector<8x128xf32>
    %c0_26 = arith.constant 0 : index
    %c0_27 = arith.constant 0 : index
    %26 = vector.load %arg9[%c0_26, %c0_27] : memref<1x128xf32, #tpu.memory_space<vmem>>, vector<1x128xf32>
    %27 = vector.broadcast %26 : vector<1x128xf32> to vector<8x128xf32>
    %28 = arith.addf %25, %27 : vector<8x128xf32>
    %29 = arith.truncf %28 : vector<8x128xf32> to vector<8x128xbf16>
    %c0_28 = arith.constant 0 : index
    %c0_29 = arith.constant 0 : index
    %30 = vector.load %arg10[%c0_28, %c0_29] : memref<8x128xbf16, #tpu.memory_space<vmem>>, vector<8x128xbf16>
    tpu.vector_store %arg10[%c0_28, %c0_29], %29 {strides = array<i32>} : memref<8x128xbf16, #tpu.memory_space<vmem>>, vector<8x128xbf16>,
    return
  }
  func.func @transform_0(%arg0: i32) -> (i32, i32) {
    %c0_i32 = arith.constant 0 : i32
    %c0_i32_0 = arith.constant 0 : i32
    return %arg0, %c0_i32 : i32, i32
  }
  func.func @transform_1(%arg0: i32) -> (i32, i32) {
    %c0_i32 = arith.constant 0 : i32
    %c0_i32_0 = arith.constant 0 : i32
    return %arg0, %c0_i32 : i32, i32
  }
  func.func @transform_2(%arg0: i32) -> (i32, i32) {
    %c0_i32 = arith.constant 0 : i32
    %c0_i32_0 = arith.constant 0 : i32
    return %arg0, %c0_i32 : i32, i32
  }
  func.func @transform_3(%arg0: i32) -> (i32, i32) {
    %c0_i32 = arith.constant 0 : i32
    %c0_i32_0 = arith.constant 0 : i32
    %c0_i32_1 = arith.constant 0 : i32
    return %c0_i32, %c0_i32_0 : i32, i32
  }
  func.func @transform_4(%arg0: i32) -> (i32, i32) {
    %c0_i32 = arith.constant 0 : i32
    %c0_i32_0 = arith.constant 0 : i32
    %c0_i32_1 = arith.constant 0 : i32
    return %c0_i32, %c0_i32_0 : i32, i32
  }
  func.func @transform_5(%arg0: i32) -> (i32, i32) {
    %c0_i32 = arith.constant 0 : i32
    %c0_i32_0 = arith.constant 0 : i32
    %c0_i32_1 = arith.constant 0 : i32
    return %c0_i32, %c0_i32_0 : i32, i32
  }
  func.func @transform_6(%arg0: i32) -> (i32, i32) {
    %c0_i32 = arith.constant 0 : i32
    %c0_i32_0 = arith.constant 0 : i32
    %c0_i32_1 = arith.constant 0 : i32
    return %c0_i32, %c0_i32_0 : i32, i32
  }
  func.func @transform_7(%arg0: i32) -> (i32, i32) {
    %c0_i32 = arith.constant 0 : i32
    %c0_i32_0 = arith.constant 0 : i32
    %c0_i32_1 = arith.constant 0 : i32
    return %c0_i32, %c0_i32_0 : i32, i32
  }
  func.func @transform_8(%arg0: i32) -> (i32, i32) {
    %c0_i32 = arith.constant 0 : i32
    %c0_i32_0 = arith.constant 0 : i32
    %c0_i32_1 = arith.constant 0 : i32
    return %c0_i32, %c0_i32_0 : i32, i32
  }
  func.func @transform_9(%arg0: i32) -> (i32, i32) {
    %c0_i32 = arith.constant 0 : i32
    %c0_i32_0 = arith.constant 0 : i32
    return %arg0, %c0_i32 : i32, i32
  }
}

</mosaic_0001>

<llo_original>
// kernel: tpu_custom_call.1
$region0: #{tpu_custom_call.1}
  #allocation0 [shape = 'u32[]', space=smem, size = 0x4, offset = 0x4, fixed_abs, tag = 'smem constant byte address 0x4 - core index']
  #allocation1 [shape = 'u32[144,128]{1,0:T(1,128)}', space=vmem, size = 0x12000, scoped, tag = 'internal scratch']
  #allocation2 [shape = 'f32[8,128]{1,0:T(8,128)}', space=vmem, size = 0x1000, scoped, tag = 'scratch operand']
  %s0 = inlined_call_operand.hbm [shape: f32[8,32], index: 0, kind: input, shape index: {}]
  %s1 = inlined_call_operand.hbm [shape: f32[8,16], index: 1, kind: input, shape index: {}]
  %s2 = inlined_call_operand.hbm [shape: f32[8,48], index: 2, kind: input, shape index: {}]
  %s3 = inlined_call_operand.hbm [shape: bf16[128,128], index: 3, kind: input, shape index: {}]
  %s4 = inlined_call_operand.vmem [shape: f32[1,128], index: 4, kind: input, shape index: {}]
  %s5 = inlined_call_operand.hbm [shape: bf16[128,128], index: 5, kind: input, shape index: {}]
  %s6 = inlined_call_operand.vmem [shape: f32[1,128], index: 6, kind: input, shape index: {}]
  %s7 = inlined_call_operand.hbm [shape: bf16[128,128], index: 7, kind: input, shape index: {}]
  %s8 = inlined_call_operand.vmem [shape: f32[1,128], index: 8, kind: input, shape index: {}]
  %s9 = inlined_call_operand.hbm [shape: bf16[8,128], index: 9, kind: output, shape index: {}]
  %s10 = sld [smem:[#allocation0]]
  $region70: #{tpu_custom_call.1} parent=0
    _
  %s12 = ssub.s32 1, %s10
  %s13 = scalar_select 0, %s12, %s10
  $region1: #{tpu_custom_call.1} parent=0
    #allocation3 [shape = 'u8[4096]{0}', space=vmem, size = 0x1000, scoped, tag = 'input window, operand 0, single buffered']
    #allocation4 [shape = 's32[1]{0}', space=sflag, size = 0x4, scoped, tag = 'scoped memory for tpu_custom_call.1']
    #allocation5 [shape = 's32[1]{0}', space=sflag, size = 0x4, scoped, tag = 'scoped memory for tpu_custom_call.1']
    #allocation6 [shape = 'u8[4096]{0}', space=vmem, size = 0x1000, scoped, tag = 'input window, operand 1, single buffered']
    #allocation7 [shape = 's32[1]{0}', space=sflag, size = 0x4, scoped, tag = 'scoped memory for tpu_custom_call.1']
    #allocation8 [shape = 'u8[4096]{0}', space=vmem, size = 0x1000, scoped, tag = 'input window, operand 2, single buffered']
    #allocation9 [shape = 'u8[32768]{0}', space=vmem, size = 0x8000, scoped, tag = 'input window, operand 3, single buffered']
    #allocation10 [shape = 's32[1]{0}', space=sflag, size = 0x4, scoped, tag = 'scoped memory for tpu_custom_call.1']
    #allocation11 [shape = 'u8[32768]{0}', space=vmem, size = 0x8000, scoped, tag = 'input window, operand 5, single buffered']
    #allocation12 [shape = 'u8[32768]{0}', space=vmem, size = 0x8000, scoped, tag = 'input window, operand 7, single buffered']
    #allocation13 [shape = 's32[1]{0}', space=sflag, size = 0x4, scoped, tag = 'scoped memory for tpu_custom_call.1']
    #allocation14 [shape = 'u8[2048]{0}', space=vmem, size = 0x800, scoped, tag = 'output window, operand 0, single buffered']
    %14 = vsyncpa [#allocation4], 0
    %15 = vsyncpa [#allocation7], 0
    %16 = vsyncpa [#allocation10], 0
    %17 = vsyncpa [#allocation13], 0
    %18 = vsyncpa [#allocation5], 0
    // Predicated region
    $region2: #{tpu_custom_call.1} parent=1 // pred_check
      _
    $region3: #{tpu_custom_call.1} parent=1 // pred_check_branch
      %20 = sbr.rel (0) target = $region5
    $region4: #{tpu_custom_call.1} parent=1 // pred_region
      %s22 = ssub.s32 128, 128
      %23 = vsyncadd [#allocation4], %s22
      %s25 = sshll.u32 [#allocation3], 4
      %s26 = int_to_ptr.vmem [resolvable:$true] %s25
      %28 = dma.hbm_to_vmem [thread:$0]  %s0, 128, %s26, [#allocation4]
    $region5: #{tpu_custom_call.1} parent=1 // pred_fallthru
      _
    // Predicated region
    $region6: #{tpu_custom_call.1} parent=1 // pred_check
      _
    $region7: #{tpu_custom_call.1} parent=1 // pred_check_branch
      %30 = sbr.rel (0) target = $region9
    $region8: #{tpu_custom_call.1} parent=1 // pred_region
      %s32 = ssub.s32 128, 128
      %33 = vsyncadd [#allocation7], %s32
      %s35 = sshll.u32 [#allocation6], 4
      %s36 = int_to_ptr.vmem [resolvable:$true] %s35
      %38 = dma.hbm_to_vmem [thread:$0]  %s1, 128, %s36, [#allocation7]
    $region9: #{tpu_custom_call.1} parent=1 // pred_fallthru
      _
    // Predicated region
    $region10: #{tpu_custom_call.1} parent=1 // pred_check
      _
    $region11: #{tpu_custom_call.1} parent=1 // pred_check_branch
      %40 = sbr.rel (0) target = $region13
    $region12: #{tpu_custom_call.1} parent=1 // pred_region
      %s42 = ssub.s32 128, 128
      %43 = vsyncadd [#allocation7], %s42
      %s45 = sshll.u32 [#allocation8], 4
      %s46 = int_to_ptr.vmem [resolvable:$true] %s45
      %48 = dma.hbm_to_vmem [thread:$0]  %s2, 128, %s46, [#allocation7]
    $region13: #{tpu_custom_call.1} parent=1 // pred_fallthru
      _
    // Predicated region
    $region14: #{tpu_custom_call.1} parent=1 // pred_check
      _
    $region15: #{tpu_custom_call.1} parent=1 // pred_check_branch
      %50 = sbr.rel (0) target = $region17
    $region16: #{tpu_custom_call.1} parent=1 // pred_region
      %s52 = ssub.s32 1024, 1024
      %53 = vsyncadd [#allocation10], %s52
      %s54 = sshll.u32 [#allocation9], 4
      %s55 = int_to_ptr.vmem [resolvable:$true] %s54
      %60 = dma.hbm_to_vmem [thread:$0]  %s3, 1024, %s55, [#allocation10], 64, 64, 4
    $region17: #{tpu_custom_call.1} parent=1 // pred_fallthru
      _
    // Predicated region
    $region18: #{tpu_custom_call.1} parent=1 // pred_check
      _
    $region19: #{tpu_custom_call.1} parent=1 // pred_check_branch
      %62 = sbr.rel (0) target = $region21
    $region20: #{tpu_custom_call.1} parent=1 // pred_region
      _
    $region21: #{tpu_custom_call.1} parent=1 // pred_fallthru
      _
    // Predicated region
    $region22: #{tpu_custom_call.1} parent=1 // pred_check
      _
    $region23: #{tpu_custom_call.1} parent=1 // pred_check_branch
      %64 = sbr.rel (0) target = $region25
    $region24: #{tpu_custom_call.1} parent=1 // pred_region
      %s66 = ssub.s32 1024, 1024
      %67 = vsyncadd [#allocation10], %s66
      %s68 = sshll.u32 [#allocation11], 4
      %s69 = int_to_ptr.vmem [resolvable:$true] %s68
      %74 = dma.hbm_to_vmem [thread:$0]  %s5, 1024, %s69, [#allocation10], 64, 64, 4
    $region25: #{tpu_custom_call.1} parent=1 // pred_fallthru
      _
    // Predicated region
    $region26: #{tpu_custom_call.1} parent=1 // pred_check
      _
    $region27: #{tpu_custom_call.1} parent=1 // pred_check_branch
      %76 = sbr.rel (0) target = $region29
    $region28: #{tpu_custom_call.1} parent=1 // pred_region
      _
    $region29: #{tpu_custom_call.1} parent=1 // pred_fallthru
      _
    // Predicated region
    $region30: #{tpu_custom_call.1} parent=1 // pred_check
      _
    $region31: #{tpu_custom_call.1} parent=1 // pred_check_branch
      %78 = sbr.rel (0) target = $region33
    $region32: #{tpu_custom_call.1} parent=1 // pred_region
      %s80 = ssub.s32 1024, 1024
      %81 = vsyncadd [#allocation13], %s80
      %s82 = sshll.u32 [#allocation12], 4
      %s83 = int_to_ptr.vmem [resolvable:$true] %s82
      %88 = dma.hbm_to_vmem [thread:$0]  %s7, 1024, %s83, [#allocation13], 64, 64, 4
    $region33: #{tpu_custom_call.1} parent=1 // pred_fallthru
      _
    // Predicated region
    $region34: #{tpu_custom_call.1} parent=1 // pred_check
      _
    $region35: #{tpu_custom_call.1} parent=1 // pred_check_branch
      %90 = sbr.rel (0) target = $region37
    $region36: #{tpu_custom_call.1} parent=1 // pred_region
      _
    $region37: #{tpu_custom_call.1} parent=1 // pred_fallthru
      _
    // Predicated region
    $region38: #{tpu_custom_call.1} parent=1 // pred_check
      _
    $region39: #{tpu_custom_call.1} parent=1 // pred_check_branch
      %92 = sbr.rel (0) target = $region41
    $region40: #{tpu_custom_call.1} parent=1 // pred_region
      %93 = dma.done [#allocation4], 128
    $region41: #{tpu_custom_call.1} parent=1 // pred_fallthru
      _
    // Predicated region
    $region42: #{tpu_custom_call.1} parent=1 // pred_check
      _
    $region43: #{tpu_custom_call.1} parent=1 // pred_check_branch
      %95 = sbr.rel (0) target = $region45
    $region44: #{tpu_custom_call.1} parent=1 // pred_region
      %96 = dma.done [#allocation7], 128
    $region45: #{tpu_custom_call.1} parent=1 // pred_fallthru
      _
    // Predicated region
    $region46: #{tpu_custom_call.1} parent=1 // pred_check
      _
    $region47: #{tpu_custom_call.1} parent=1 // pred_check_branch
      %98 = sbr.rel (0) target = $region49
    $region48: #{tpu_custom_call.1} parent=1 // pred_region
      %99 = dma.done [#allocation7], 128
    $region49: #{tpu_custom_call.1} parent=1 // pred_fallthru
      _
    // Predicated region
    $region50: #{tpu_custom_call.1} parent=1 // pred_check
      _
    $region51: #{tpu_custom_call.1} parent=1 // pred_check_branch
      %101 = sbr.rel (0) target = $region53
    $region52: #{tpu_custom_call.1} parent=1 // pred_region
      %102 = dma.done [#allocation10], 1024
    $region53: #{tpu_custom_call.1} parent=1 // pred_fallthru
      _
    // Predicated region
    $region54: #{tpu_custom_call.1} parent=1 // pred_check
      _
    $region55: #{tpu_custom_call.1} parent=1 // pred_check_branch
      %104 = sbr.rel (0) target = $region57
    $region56: #{tpu_custom_call.1} parent=1 // pred_region
      %105 = dma.done [#allocation10], 1024
    $region57: #{tpu_custom_call.1} parent=1 // pred_fallthru
      _
    // Predicated region
    $region58: #{tpu_custom_call.1} parent=1 // pred_check
      _
    $region59: #{tpu_custom_call.1} parent=1 // pred_check_branch
      %107 = sbr.rel (0) target = $region61
    $region60: #{tpu_custom_call.1} parent=1 // pred_region
      %108 = dma.done [#allocation13], 1024
    $region61: #{tpu_custom_call.1} parent=1 // pred_fallthru
      _
    %vm110 = vcmask 1048320
    %111 = vst.msk [vmem:[#allocation2] sm:$0xff] %vm110, 0.0
    %v112 = vld [vmem:[#allocation3] sm:$0xff]
    %vm113 = vcmask 261120
    %114 = vst.msk [vmem:[#allocation2] sm:$0xff] %vm113, %v112
    %v115 = vld [vmem:[#allocation6] sm:$0xff]
    %117 = vrot.lane.b32.xlu0 %v115, 32
    %v118 = vpop.permute.xlu0 %117
    %vm120 = vcmask 392448
    %121 = vst.msk [vmem:[#allocation2] sm:$0xff] %vm120, %v118
    %v122 = vld [vmem:[#allocation8] sm:$0xff]
    %124 = vrot.lane.b32.xlu0 %v122, 48
    %v125 = vpop.permute.xlu0 %124
    %vm127 = vcmask 785792
    %128 = vst.msk [vmem:[#allocation2] sm:$0xff] %vm127, %v125
    %v129 = vld [vmem:[#allocation2] sm:$0xff]
    %v130 = vpack.c.bf16 %v129, %v129
    %v131 = vld [vmem:[#allocation9] sm:$0xf]
    %v132 = vld [vmem:[#allocation9 + $0x4] sm:$0xf]
    %v133 = vld [vmem:[#allocation9 + $0x8] sm:$0xf]
    %v134 = vld [vmem:[#allocation9 + $0xc] sm:$0xf]
    %v135 = vld [vmem:[#allocation9 + $0x10] sm:$0xf]
    %v136 = vld [vmem:[#allocation9 + $0x14] sm:$0xf]
    %v137 = vld [vmem:[#allocation9 + $0x18] sm:$0xf]
    %v138 = vld [vmem:[#allocation9 + $0x1c] sm:$0xf]
    %v139 = vld [vmem:[#allocation9 + $0x20] sm:$0xf]
    %v140 = vld [vmem:[#allocation9 + $0x24] sm:$0xf]
    %v141 = vld [vmem:[#allocation9 + $0x28] sm:$0xf]
    %v142 = vld [vmem:[#allocation9 + $0x2c] sm:$0xf]
    %v143 = vld [vmem:[#allocation9 + $0x30] sm:$0xf]
    %v144 = vld [vmem:[#allocation9 + $0x34] sm:$0xf]
    %v145 = vld [vmem:[#allocation9 + $0x38] sm:$0xf]
    %v146 = vld [vmem:[#allocation9 + $0x3c] sm:$0xf]
    %v147 = vld [vmem:[%s4] sm:$0x1]
    %v149 = vlaneseq
    %v150 = vshrl.u32 %v149, 7
    %v151 = vsub.s32 0, %v150
    %v152 = vrot.slane %v147, %v151
    %v170 = vunpack.c.l.b16 %v131
    %v171 = vunpack.c.l.b16 %v132
    %v172 = vunpack.c.l.b16 %v133
    %v173 = vunpack.c.l.b16 %v134
    %v174 = vunpack.c.l.b16 %v135
    %v175 = vunpack.c.l.b16 %v136
    %v176 = vunpack.c.l.b16 %v137
    %v177 = vunpack.c.l.b16 %v138
    %v178 = vunpack.c.l.b16 %v139
    %v179 = vunpack.c.l.b16 %v140
    %v180 = vunpack.c.l.b16 %v141
    %v181 = vunpack.c.l.b16 %v142
    %v182 = vunpack.c.l.b16 %v143
    %v183 = vunpack.c.l.b16 %v144
    %v184 = vunpack.c.l.b16 %v145
    %v185 = vunpack.c.l.b16 %v146
    %v186 = vpack.c.b16 %v171, %v170
    %v187 = vpack.c.b16 %v173, %v172
    %v188 = vpack.c.b16 %v175, %v174
    %v189 = vpack.c.b16 %v177, %v176
    %v190 = vpack.c.b16 %v179, %v178
    %v191 = vpack.c.b16 %v181, %v180
    %v192 = vpack.c.b16 %v183, %v182
    %v193 = vpack.c.b16 %v185, %v184
    %202 = vmatprep.subr.bf16.mxu0 0
    %203 = vmatpush1.bf16.msra.mxu0 %v193
    %204 = vmatprep.subr.bf16.mxu0 0
    %205 = vmatpush1.bf16.msra.mxu0 %v192
    %206 = vmatprep.subr.bf16.mxu0 0
    %207 = vmatpush1.bf16.msra.mxu0 %v191
    %208 = vmatprep.subr.bf16.mxu0 0
    %209 = vmatpush1.bf16.msra.mxu0 %v190
    %210 = vmatprep.subr.bf16.mxu0 0
    %211 = vmatpush1.bf16.msra.mxu0 %v189
    %212 = vmatprep.subr.bf16.mxu0 0
    %213 = vmatpush1.bf16.msra.mxu0 %v188
    %214 = vmatprep.subr.bf16.mxu0 0
    %215 = vmatpush1.bf16.msra.mxu0 %v187
    %216 = vmatprep.subr.bf16.mxu0 0
    %217 = vmatpush1.bf16.msra.mxu0 %v186
    %218 = vmatprep.subr.bf16.mxu0 0
    %219 = vmatpush2.bf16.msra.mxu0 0
    %220 = vmatprep.subr.bf16.mxu0 0
    %221 = vmatpush2.bf16.msra.mxu0 0
    %222 = vmatprep.subr.bf16.mxu0 0
    %223 = vmatpush2.bf16.msra.mxu0 0
    %224 = vmatprep.subr.bf16.mxu0 0
    %225 = vmatpush2.bf16.msra.mxu0 0
    %226 = vmatprep.subr.bf16.mxu0 0
    %227 = vmatpush2.bf16.msra.mxu0 0
    %228 = vmatprep.subr.bf16.mxu0 0
    %229 = vmatpush2.bf16.msra.mxu0 0
    %230 = vmatprep.subr.bf16.mxu0 0
    %231 = vmatpush2.bf16.msra.mxu0 0
    %232 = vmatprep.subr.bf16.mxu0 0
    %233 = vmatpush2.bf16.msra.mxu0 0
    %234 = vmatprep.mubr.bf16.mxu0 0
    %235 = vmatmul.mubr.bf16.gmra.mxu0 %v130
    %v236 = vpop.f32.mrf.mxu0
    %v237 = vadd.f32 %v152, %v236
    %v238 = vpop.f32.mrf.mxu0
    %v239 = vpop.f32.mrf.mxu0
    %v240 = vpop.f32.mrf.mxu0
    %241 = vdwg.mxu0
    %v242 = vpack.c.bf16 %v237, %v237
    %v243 = vld [vmem:[#allocation11] sm:$0xf]
    %v244 = vld [vmem:[#allocation11 + $0x4] sm:$0xf]
    %v245 = vld [vmem:[#allocation11 + $0x8] sm:$0xf]
    %v246 = vld [vmem:[#allocation11 + $0xc] sm:$0xf]
    %v247 = vld [vmem:[#allocation11 + $0x10] sm:$0xf]
    %v248 = vld [vmem:[#allocation11 + $0x14] sm:$0xf]
    %v249 = vld [vmem:[#allocation11 + $0x18] sm:$0xf]
    %v250 = vld [vmem:[#allocation11 + $0x1c] sm:$0xf]
    %v251 = vld [vmem:[#allocation11 + $0x20] sm:$0xf]
    %v252 = vld [vmem:[#allocation11 + $0x24] sm:$0xf]
    %v253 = vld [vmem:[#allocation11 + $0x28] sm:$0xf]
    %v254 = vld [vmem:[#allocation11 + $0x2c] sm:$0xf]
    %v255 = vld [vmem:[#allocation11 + $0x30] sm:$0xf]
    %v256 = vld [vmem:[#allocation11 + $0x34] sm:$0xf]
    %v257 = vld [vmem:[#allocation11 + $0x38] sm:$0xf]
    %v258 = vld [vmem:[#allocation11 + $0x3c] sm:$0xf]
    %v259 = vld [vmem:[%s6] sm:$0x1]
    %v261 = vlaneseq
    %v262 = vshrl.u32 %v261, 7
    %v263 = vsub.s32 0, %v262
    %v264 = vrot.slane %v259, %v263
    %v282 = vunpack.c.l.b16 %v243
    %v283 = vunpack.c.l.b16 %v244
    %v284 = vunpack.c.l.b16 %v245
    %v285 = vunpack.c.l.b16 %v246
    %v286 = vunpack.c.l.b16 %v247
    %v287 = vunpack.c.l.b16 %v248
    %v288 = vunpack.c.l.b16 %v249
    %v289 = vunpack.c.l.b16 %v250
    %v290 = vunpack.c.l.b16 %v251
    %v291 = vunpack.c.l.b16 %v252
    %v292 = vunpack.c.l.b16 %v253
    %v293 = vunpack.c.l.b16 %v254
    %v294 = vunpack.c.l.b16 %v255
    %v295 = vunpack.c.l.b16 %v256
    %v296 = vunpack.c.l.b16 %v257
    %v297 = vunpack.c.l.b16 %v258
    %v298 = vpack.c.b16 %v283, %v282
    %v299 = vpack.c.b16 %v285, %v284
    %v300 = vpack.c.b16 %v287, %v286
    %v301 = vpack.c.b16 %v289, %v288
    %v302 = vpack.c.b16 %v291, %v290
    %v303 = vpack.c.b16 %v293, %v292
    %v304 = vpack.c.b16 %v295, %v294
    %v305 = vpack.c.b16 %v297, %v296
    %314 = vmatprep.subr.bf16.mxu0 0
    %315 = vmatpush1.bf16.msra.mxu0 %v305
    %316 = vmatprep.subr.bf16.mxu0 0
    %317 = vmatpush1.bf16.msra.mxu0 %v304
    %318 = vmatprep.subr.bf16.mxu0 0
    %319 = vmatpush1.bf16.msra.mxu0 %v303
    %320 = vmatprep.subr.bf16.mxu0 0
    %321 = vmatpush1.bf16.msra.mxu0 %v302
    %322 = vmatprep.subr.bf16.mxu0 0
    %323 = vmatpush1.bf16.msra.mxu0 %v301
    %324 = vmatprep.subr.bf16.mxu0 0
    %325 = vmatpush1.bf16.msra.mxu0 %v300
    %326 = vmatprep.subr.bf16.mxu0 0
    %327 = vmatpush1.bf16.msra.mxu0 %v299
    %328 = vmatprep.subr.bf16.mxu0 0
    %329 = vmatpush1.bf16.msra.mxu0 %v298
    %330 = vmatprep.subr.bf16.mxu0 0
    %331 = vmatpush2.bf16.msra.mxu0 0
    %332 = vmatprep.subr.bf16.mxu0 0
    %333 = vmatpush2.bf16.msra.mxu0 0
    %334 = vmatprep.subr.bf16.mxu0 0
    %335 = vmatpush2.bf16.msra.mxu0 0
    %336 = vmatprep.subr.bf16.mxu0 0
    %337 = vmatpush2.bf16.msra.mxu0 0
    %338 = vmatprep.subr.bf16.mxu0 0
    %339 = vmatpush2.bf16.msra.mxu0 0
    %340 = vmatprep.subr.bf16.mxu0 0
    %341 = vmatpush2.bf16.msra.mxu0 0
    %342 = vmatprep.subr.bf16.mxu0 0
    %343 = vmatpush2.bf16.msra.mxu0 0
    %344 = vmatprep.subr.bf16.mxu0 0
    %345 = vmatpush2.bf16.msra.mxu0 0
    %346 = vmatprep.mubr.bf16.mxu0 0
    %347 = vmatmul.mubr.bf16.gmra.mxu0 %v242
    %v348 = vpop.f32.mrf.mxu0
    %v349 = vadd.f32 %v264, %v348
    %v350 = vpop.f32.mrf.mxu0
    %v351 = vpop.f32.mrf.mxu0
    %v352 = vpop.f32.mrf.mxu0
    %353 = vdwg.mxu0
    %v354 = vmax.f32 %v349, 0.0
    %v355 = vpack.c.bf16 %v354, %v354
    %v356 = vld [vmem:[#allocation12] sm:$0xf]
    %v357 = vld [vmem:[#allocation12 + $0x4] sm:$0xf]
    %v358 = vld [vmem:[#allocation12 + $0x8] sm:$0xf]
    %v359 = vld [vmem:[#allocation12 + $0xc] sm:$0xf]
    %v360 = vld [vmem:[#allocation12 + $0x10] sm:$0xf]
    %v361 = vld [vmem:[#allocation12 + $0x14] sm:$0xf]
    %v362 = vld [vmem:[#allocation12 + $0x18] sm:$0xf]
    %v363 = vld [vmem:[#allocation12 + $0x1c] sm:$0xf]
    %v364 = vld [vmem:[#allocation12 + $0x20] sm:$0xf]
    %v365 = vld [vmem:[#allocation12 + $0x24] sm:$0xf]
    %v366 = vld [vmem:[#allocation12 + $0x28] sm:$0xf]
    %v367 = vld [vmem:[#allocation12 + $0x2c] sm:$0xf]
    %v368 = vld [vmem:[#allocation12 + $0x30] sm:$0xf]
    %v369 = vld [vmem:[#allocation12 + $0x34] sm:$0xf]
    %v370 = vld [vmem:[#allocation12 + $0x38] sm:$0xf]
    %v371 = vld [vmem:[#allocation12 + $0x3c] sm:$0xf]
    %v372 = vld [vmem:[%s8] sm:$0x1]
    %v374 = vlaneseq
    %v375 = vshrl.u32 %v374, 7
    %v376 = vsub.s32 0, %v375
    %v377 = vrot.slane %v372, %v376
    %v395 = vunpack.c.l.b16 %v356
    %v396 = vunpack.c.l.b16 %v357
    %v397 = vunpack.c.l.b16 %v358
    %v398 = vunpack.c.l.b16 %v359
    %v399 = vunpack.c.l.b16 %v360
    %v400 = vunpack.c.l.b16 %v361
    %v401 = vunpack.c.l.b16 %v362
    %v402 = vunpack.c.l.b16 %v363
    %v403 = vunpack.c.l.b16 %v364
    %v404 = vunpack.c.l.b16 %v365
    %v405 = vunpack.c.l.b16 %v366
    %v406 = vunpack.c.l.b16 %v367
    %v407 = vunpack.c.l.b16 %v368
    %v408 = vunpack.c.l.b16 %v369
    %v409 = vunpack.c.l.b16 %v370
    %v410 = vunpack.c.l.b16 %v371
    %v411 = vpack.c.b16 %v396, %v395
    %v412 = vpack.c.b16 %v398, %v397
    %v413 = vpack.c.b16 %v400, %v399
    %v414 = vpack.c.b16 %v402, %v401
    %v415 = vpack.c.b16 %v404, %v403
    %v416 = vpack.c.b16 %v406, %v405
    %v417 = vpack.c.b16 %v408, %v407
    %v418 = vpack.c.b16 %v410, %v409
    %427 = vmatprep.subr.bf16.mxu0 0
    %428 = vmatpush1.bf16.msra.mxu0 %v418
    %429 = vmatprep.subr.bf16.mxu0 0
    %430 = vmatpush1.bf16.msra.mxu0 %v417
    %431 = vmatprep.subr.bf16.mxu0 0
    %432 = vmatpush1.bf16.msra.mxu0 %v416
    %433 = vmatprep.subr.bf16.mxu0 0
    %434 = vmatpush1.bf16.msra.mxu0 %v415
    %435 = vmatprep.subr.bf16.mxu0 0
    %436 = vmatpush1.bf16.msra.mxu0 %v414
    %437 = vmatprep.subr.bf16.mxu0 0
    %438 = vmatpush1.bf16.msra.mxu0 %v413
    %439 = vmatprep.subr.bf16.mxu0 0
    %440 = vmatpush1.bf16.msra.mxu0 %v412
    %441 = vmatprep.subr.bf16.mxu0 0
    %442 = vmatpush1.bf16.msra.mxu0 %v411
    %443 = vmatprep.subr.bf16.mxu0 0
    %444 = vmatpush2.bf16.msra.mxu0 0
    %445 = vmatprep.subr.bf16.mxu0 0
    %446 = vmatpush2.bf16.msra.mxu0 0
    %447 = vmatprep.subr.bf16.mxu0 0
    %448 = vmatpush2.bf16.msra.mxu0 0
    %449 = vmatprep.subr.bf16.mxu0 0
    %450 = vmatpush2.bf16.msra.mxu0 0
    %451 = vmatprep.subr.bf16.mxu0 0
    %452 = vmatpush2.bf16.msra.mxu0 0
    %453 = vmatprep.subr.bf16.mxu0 0
    %454 = vmatpush2.bf16.msra.mxu0 0
    %455 = vmatprep.subr.bf16.mxu0 0
    %456 = vmatpush2.bf16.msra.mxu0 0
    %457 = vmatprep.subr.bf16.mxu0 0
    %458 = vmatpush2.bf16.msra.mxu0 0
    %459 = vmatprep.mubr.bf16.mxu0 0
    %460 = vmatmul.mubr.bf16.gmra.mxu0 %v355
    %v461 = vpop.f32.mrf.mxu0
    %v462 = vadd.f32 %v377, %v461
    %v463 = vpop.f32.mrf.mxu0
    %v464 = vpop.f32.mrf.mxu0
    %v465 = vpop.f32.mrf.mxu0
    %466 = vdwg.mxu0
    %v467 = vpack.c.bf16 %v462, %v462
    %468 = vst [vmem:[#allocation14] sm:$0xf] %v467
    // Predicated region
    $region62: #{tpu_custom_call.1} parent=1 // pred_check
      _
    $region63: #{tpu_custom_call.1} parent=1 // pred_check_branch
      %470 = sbr.rel (0) target = $region65
    $region64: #{tpu_custom_call.1} parent=1 // pred_region
      %s472 = ssub.s32 64, 64
      %473 = vsyncadd [#allocation5], %s472
      %s475 = sshll.u32 [#allocation14], 4
      %s476 = int_to_ptr.vmem [resolvable:$true] %s475
      %478 = dma.vmem_to_hbm [thread:$0]  %s476, 64, %s9, [#allocation5]
    $region65: #{tpu_custom_call.1} parent=1 // pred_fallthru
      _
    // Predicated region
    $region66: #{tpu_custom_call.1} parent=1 // pred_check
      _
    $region67: #{tpu_custom_call.1} parent=1 // pred_check_branch
      %480 = sbr.rel (0) target = $region69
    $region68: #{tpu_custom_call.1} parent=1 // pred_region
      %481 = dma.done [#allocation5], 64
    $region69: #{tpu_custom_call.1} parent=1 // pred_fallthru
      _
    %482 = vsyncpa [#allocation4], 1
    %483 = vsyncpa [#allocation7], 1
    %484 = vsyncpa [#allocation10], 1
    %485 = vsyncpa [#allocation13], 1
    %486 = vsyncpa [#allocation5], 1

</llo_original>
